<compile_context>
chip_gen: v7x
topology: tpu7x:2x2x1
jax: 0.10.0
libtpu: 0.0.40
codegen_flags: <defaults>
</compile_context>

<pallas_src>
import jax
import jax.numpy as jnp
from jax.experimental import pallas as pl
from jax.experimental.pallas import tpu as pltpu


def _linear_relu_kernel(x_ref, w_ref, b_ref, o_ref):
    """Fused Linear(K, 1) + bias + ReLU over the whole problem in one shot.

    x_ref: (B, R, C) activations in VMEM
    w_ref: (R, C)    weight row in VMEM (broadcast over batch)
    b_ref: (1,)      bias scalar in SMEM
    o_ref: (B, 1)    output in VMEM
    """
    prod = x_ref[...] * w_ref[...]                 # VPU MAC, w broadcast over B
    part = jnp.sum(prod, axis=2)                   # (B, R)  cross-lane reduce
    y = jnp.sum(part, axis=1, keepdims=True)       # (B, 1)  cross-lane reduce
    y = y + b_ref[0]                               # fused bias
    o_ref[...] = jnp.maximum(y, 0.0).astype(o_ref.dtype)  # fused ReLU


def sample_forward(x, w, b):
    """x: (B, ...) flattening to (B, 62*1000); w: (1, 62*1000); b: (1,)."""
    B = x.shape[0]
    xf = x.reshape(B, -1)                          # Flatten_MEG (metadata only)
    K = xf.shape[1]
    assert w.shape == (1, K) and b.shape == (1,)

    # Lane/sublane-dense presentation: keep the natural trailing axis of x as
    # the lane axis.  Free reshape (contiguous, no pad, no copy); the row-major
    # pairing of x and w elements is preserved, so sum over (R, C) == the dot.
    C = x.shape[-1] if x.ndim > 2 else K
    R = K // C
    x3 = xf.reshape(B, R, C)
    w3 = w.reshape(R, C)

    out = pl.pallas_call(
        _linear_relu_kernel,
        out_shape=jax.ShapeDtypeStruct((B, 1), jnp.float32),
        in_specs=[
            pl.BlockSpec(memory_space=pltpu.MemorySpace.VMEM),   # x, full array
            pl.BlockSpec(memory_space=pltpu.MemorySpace.VMEM),   # w, full array
            pl.BlockSpec(memory_space=pltpu.MemorySpace.SMEM),   # bias scalar
        ],
        out_specs=pl.BlockSpec(memory_space=pltpu.MemorySpace.VMEM),
    )(x3, w3, b)

    # nn.ReLU fused above; nn.Dropout(1) is identity in eval mode.
    return jnp.squeeze(out, axis=1)                # .squeeze(1)


if __name__ == "__main__":
    key = jax.random.PRNGKey(0)
    kx, kw, kb = jax.random.split(key, 3)

    B = 2
    K = 62 * 1000
    # Input consistent with the module: (B, 62 electrodes, 1000 time steps).
    x = jax.random.normal(kx, (B, 62, 1000), jnp.float32)
    # PyTorch nn.Linear(62*1000, 1) layout: weight (1, K), bias (1,).
    w = jax.random.normal(kw, (1, K), jnp.float32) * jnp.sqrt(1.0 / K)
    b = 0.1 * jax.random.normal(kb, (1,), jnp.float32)

    y = sample_forward(x, w, b)
    y = jax.block_until_ready(y)

    # Plain-JAX reference check.
    y_ref = jnp.maximum(x.reshape(B, -1) @ w.T + b, 0.0)[:, 0]
    assert y.shape == (B,), y.shape
    assert bool(jnp.all(jnp.isfinite(y)))
    assert bool(jnp.allclose(y, y_ref, atol=1e-3, rtol=1e-3)), (y, y_ref)
    print("KERNEL_OK")
</pallas_src>

<mosaic_0001>
module attributes {stable_mosaic.version = 11 : i64} {
  func.func @_linear_relu_kernel(%arg0: memref<2x62x1000xf32, #tpu.memory_space<vmem>>, %arg1: memref<62x1000xf32, #tpu.memory_space<vmem>>, %arg2: memref<1xf32, #tpu.memory_space<smem>>, %arg3: memref<2x1xf32, #tpu.memory_space<vmem>>) attributes {dimension_semantics = [], scalar_prefetch = 0 : i64, scratch_operands = 0 : i64, tpu.core_type = #tpu.core_type<tc>} {
    %c0 = arith.constant 0 : index
    %c0_0 = arith.constant 0 : index
    %c0_1 = arith.constant 0 : index
    %0 = vector.load %arg0[%c0, %c0_0, %c0_1] : memref<2x62x1000xf32, #tpu.memory_space<vmem>>, vector<2x62x1000xf32>
    %c0_2 = arith.constant 0 : index
    %c0_3 = arith.constant 0 : index
    %1 = vector.load %arg1[%c0_2, %c0_3] : memref<62x1000xf32, #tpu.memory_space<vmem>>, vector<62x1000xf32>
    %2 = vector.shape_cast %1 : vector<62x1000xf32> to vector<1x62x1000xf32>
    %3 = vector.broadcast %2 : vector<1x62x1000xf32> to vector<2x62x1000xf32>
    %4 = arith.mulf %0, %3 : vector<2x62x1000xf32>
    %cst = arith.constant dense<0.000000e+00> : vector<2x62xf32>
    %5 = vector.multi_reduction <add>, %4, %cst [2] : vector<2x62x1000xf32> to vector<2x62xf32>
    %cst_4 = arith.constant dense<0.000000e+00> : vector<2xf32>
    %6 = vector.multi_reduction <add>, %5, %cst_4 [1] : vector<2x62xf32> to vector<2xf32>
    %7 = vector.shape_cast %6 : vector<2xf32> to vector<2x1xf32>
    %c0_5 = arith.constant 0 : index
    %8 = memref.load %arg2[%c0_5] : memref<1xf32, #tpu.memory_space<smem>>
    %9 = vector.broadcast %8 : f32 to vector<2x1xf32>
    %10 = arith.addf %7, %9 : vector<2x1xf32>
    %cst_6 = arith.constant 0.000000e+00 : f32
    %11 = vector.broadcast %cst_6 : f32 to vector<2x1xf32>
    %12 = arith.maximumf %10, %11 : vector<2x1xf32>
    %c0_7 = arith.constant 0 : index
    %c0_8 = arith.constant 0 : index
    %13 = vector.load %arg3[%c0_7, %c0_8] : memref<2x1xf32, #tpu.memory_space<vmem>>, vector<2x1xf32>
    tpu.vector_store %arg3[%c0_7, %c0_8], %12 {strides = array<i32>} : memref<2x1xf32, #tpu.memory_space<vmem>>, vector<2x1xf32>,
    return
  }
}

</mosaic_0001>

<llo_original>
// kernel: tpu_custom_call.1
$region0: #{tpu_custom_call.1}
  #allocation0 [shape = 'u32[]', space=smem, size = 0x4, offset = 0x4, fixed_abs, tag = 'smem constant byte address 0x4 - core index']
  #allocation1 [shape = 'u32[144,128]{1,0:T(1,128)}', space=vmem, size = 0x12000, scoped, tag = 'internal scratch']
  #allocation2 [shape = 'f32[1]{0:T(128)S(6)}', space=smem, size = 0x200, scoped, tag = 'scoped memory for tpu_custom_call.1']
  %s0 = inlined_call_operand.vmem [shape: f32[2,62,1000], index: 0, kind: input, shape index: {}]
  %s1 = inlined_call_operand.vmem [shape: f32[62,1000], index: 1, kind: input, shape index: {}]
  %s2 = inlined_call_operand.<no memory space> [shape: f32[1], index: 2, kind: input, shape index: {}]
  %s3 = inlined_call_operand.vmem [shape: f32[2,1], index: 3, kind: output, shape index: {}]
  %s4 = sld [smem:[#allocation0]]
  $region22: #{tpu_custom_call.1} parent=0
    _
  %s6 = ssub.s32 1, %s4
  %s7 = scalar_select 0, %s6, %s4
  %8 = sst [smem:[#allocation2]] %s2
  // Predicated region
  $region2: #{tpu_custom_call.1} parent=0 // pred_check
    _
  $region3: #{tpu_custom_call.1} parent=0 // pred_check_branch
    %10 = sbr.rel (0) target = $region5
  $region4: #{tpu_custom_call.1} parent=0 // pred_region
    _
  $region5: #{tpu_custom_call.1} parent=0 // pred_fallthru
    _
  // Predicated region
  $region6: #{tpu_custom_call.1} parent=0 // pred_check
    _
  $region7: #{tpu_custom_call.1} parent=0 // pred_check_branch
    %12 = sbr.rel (0) target = $region9
  $region8: #{tpu_custom_call.1} parent=0 // pred_region
    _
  $region9: #{tpu_custom_call.1} parent=0 // pred_fallthru
    _
  // Predicated region
  $region10: #{tpu_custom_call.1} parent=0 // pred_check
    _
  $region11: #{tpu_custom_call.1} parent=0 // pred_check_branch
    %14 = sbr.rel (0) target = $region13
  $region12: #{tpu_custom_call.1} parent=0 // pred_region
    _
  $region13: #{tpu_custom_call.1} parent=0 // pred_fallthru
    _
  %v15 = vld [vmem:[%s0] sm:$0xff]
  %v16 = vld [vmem:[%s0 + $0x8] sm:$0xff]
  %v17 = vld [vmem:[%s0 + $0x10] sm:$0xff]
  %v18 = vld [vmem:[%s0 + $0x18] sm:$0xff]
  %v19 = vld [vmem:[%s0 + $0x20] sm:$0xff]
  %v20 = vld [vmem:[%s0 + $0x28] sm:$0xff]
  %v21 = vld [vmem:[%s0 + $0x30] sm:$0xff]
  %v22 = vld [vmem:[%s0 + $0x38] sm:$0xff]
  %v23 = vld [vmem:[%s0 + $0x40] sm:$0xff]
  %v24 = vld [vmem:[%s0 + $0x48] sm:$0xff]
  %v25 = vld [vmem:[%s0 + $0x50] sm:$0xff]
  %v26 = vld [vmem:[%s0 + $0x58] sm:$0xff]
  %v27 = vld [vmem:[%s0 + $0x60] sm:$0xff]
  %v28 = vld [vmem:[%s0 + $0x68] sm:$0xff]
  %v29 = vld [vmem:[%s0 + $0x70] sm:$0xff]
  %v30 = vld [vmem:[%s0 + $0x78] sm:$0xff]
  %v31 = vld [vmem:[%s0 + $0x80] sm:$0xff]
  %v32 = vld [vmem:[%s0 + $0x88] sm:$0xff]
  %v33 = vld [vmem:[%s0 + $0x90] sm:$0xff]
  %v34 = vld [vmem:[%s0 + $0x98] sm:$0xff]
  %v35 = vld [vmem:[%s0 + $0xa0] sm:$0xff]
  %v36 = vld [vmem:[%s0 + $0xa8] sm:$0xff]
  %v37 = vld [vmem:[%s0 + $0xb0] sm:$0xff]
  %v38 = vld [vmem:[%s0 + $0xb8] sm:$0xff]
  %v39 = vld [vmem:[%s0 + $0xc0] sm:$0xff]
  %v40 = vld [vmem:[%s0 + $0xc8] sm:$0xff]
  %v41 = vld [vmem:[%s0 + $0xd0] sm:$0xff]
  %v42 = vld [vmem:[%s0 + $0xd8] sm:$0xff]
  %v43 = vld [vmem:[%s0 + $0xe0] sm:$0xff]
  %v44 = vld [vmem:[%s0 + $0xe8] sm:$0xff]
  %v45 = vld [vmem:[%s0 + $0xf0] sm:$0xff]
  %v46 = vld [vmem:[%s0 + $0xf8] sm:$0xff]
  %v47 = vld [vmem:[%s0 + $0x100] sm:$0xff]
  %v48 = vld [vmem:[%s0 + $0x108] sm:$0xff]
  %v49 = vld [vmem:[%s0 + $0x110] sm:$0xff]
  %v50 = vld [vmem:[%s0 + $0x118] sm:$0xff]
  %v51 = vld [vmem:[%s0 + $0x120] sm:$0xff]
  %v52 = vld [vmem:[%s0 + $0x128] sm:$0xff]
  %v53 = vld [vmem:[%s0 + $0x130] sm:$0xff]
  %v54 = vld [vmem:[%s0 + $0x138] sm:$0xff]
  %v55 = vld [vmem:[%s0 + $0x140] sm:$0xff]
  %v56 = vld [vmem:[%s0 + $0x148] sm:$0xff]
  %v57 = vld [vmem:[%s0 + $0x150] sm:$0xff]
  %v58 = vld [vmem:[%s0 + $0x158] sm:$0xff]
  %v59 = vld [vmem:[%s0 + $0x160] sm:$0xff]
  %v60 = vld [vmem:[%s0 + $0x168] sm:$0xff]
  %v61 = vld [vmem:[%s0 + $0x170] sm:$0xff]
  %v62 = vld [vmem:[%s0 + $0x178] sm:$0xff]
  %v63 = vld [vmem:[%s0 + $0x180] sm:$0xff]
  %v64 = vld [vmem:[%s0 + $0x188] sm:$0xff]
  %v65 = vld [vmem:[%s0 + $0x190] sm:$0xff]
  %v66 = vld [vmem:[%s0 + $0x198] sm:$0xff]
  %v67 = vld [vmem:[%s0 + $0x1a0] sm:$0xff]
  %v68 = vld [vmem:[%s0 + $0x1a8] sm:$0xff]
  %v69 = vld [vmem:[%s0 + $0x1b0] sm:$0xff]
  %v70 = vld [vmem:[%s0 + $0x1b8] sm:$0xff]
  %v71 = vld [vmem:[%s0 + $0x1c0] sm:$0x3f]
  %v72 = vld [vmem:[%s0 + $0x1c8] sm:$0x3f]
  %v73 = vld [vmem:[%s0 + $0x1d0] sm:$0x3f]
  %v74 = vld [vmem:[%s0 + $0x1d8] sm:$0x3f]
  %v75 = vld [vmem:[%s0 + $0x1e0] sm:$0x3f]
  %v76 = vld [vmem:[%s0 + $0x1e8] sm:$0x3f]
  %v77 = vld [vmem:[%s0 + $0x1f0] sm:$0x3f]
  %v78 = vld [vmem:[%s0 + $0x1f8] sm:$0x3f]
  %v79 = vld [vmem:[%s0 + $0x200] sm:$0xff]
  %v80 = vld [vmem:[%s0 + $0x208] sm:$0xff]
  %v81 = vld [vmem:[%s0 + $0x210] sm:$0xff]
  %v82 = vld [vmem:[%s0 + $0x218] sm:$0xff]
  %v83 = vld [vmem:[%s0 + $0x220] sm:$0xff]
  %v84 = vld [vmem:[%s0 + $0x228] sm:$0xff]
  %v85 = vld [vmem:[%s0 + $0x230] sm:$0xff]
  %v86 = vld [vmem:[%s0 + $0x238] sm:$0xff]
  %v87 = vld [vmem:[%s0 + $0x240] sm:$0xff]
  %v88 = vld [vmem:[%s0 + $0x248] sm:$0xff]
  %v89 = vld [vmem:[%s0 + $0x250] sm:$0xff]
  %v90 = vld [vmem:[%s0 + $0x258] sm:$0xff]
  %v91 = vld [vmem:[%s0 + $0x260] sm:$0xff]
  %v92 = vld [vmem:[%s0 + $0x268] sm:$0xff]
  %v93 = vld [vmem:[%s0 + $0x270] sm:$0xff]
  %v94 = vld [vmem:[%s0 + $0x278] sm:$0xff]
  %v95 = vld [vmem:[%s0 + $0x280] sm:$0xff]
  %v96 = vld [vmem:[%s0 + $0x288] sm:$0xff]
  %v97 = vld [vmem:[%s0 + $0x290] sm:$0xff]
  %v98 = vld [vmem:[%s0 + $0x298] sm:$0xff]
  %v99 = vld [vmem:[%s0 + $0x2a0] sm:$0xff]
  %v100 = vld [vmem:[%s0 + $0x2a8] sm:$0xff]
  %v101 = vld [vmem:[%s0 + $0x2b0] sm:$0xff]
  %v102 = vld [vmem:[%s0 + $0x2b8] sm:$0xff]
  %v103 = vld [vmem:[%s0 + $0x2c0] sm:$0xff]
  %v104 = vld [vmem:[%s0 + $0x2c8] sm:$0xff]
  %v105 = vld [vmem:[%s0 + $0x2d0] sm:$0xff]
  %v106 = vld [vmem:[%s0 + $0x2d8] sm:$0xff]
  %v107 = vld [vmem:[%s0 + $0x2e0] sm:$0xff]
  %v108 = vld [vmem:[%s0 + $0x2e8] sm:$0xff]
  %v109 = vld [vmem:[%s0 + $0x2f0] sm:$0xff]
  %v110 = vld [vmem:[%s0 + $0x2f8] sm:$0xff]
  %v111 = vld [vmem:[%s0 + $0x300] sm:$0xff]
  %v112 = vld [vmem:[%s0 + $0x308] sm:$0xff]
  %v113 = vld [vmem:[%s0 + $0x310] sm:$0xff]
  %v114 = vld [vmem:[%s0 + $0x318] sm:$0xff]
  %v115 = vld [vmem:[%s0 + $0x320] sm:$0xff]
  %v116 = vld [vmem:[%s0 + $0x328] sm:$0xff]
  %v117 = vld [vmem:[%s0 + $0x330] sm:$0xff]
  %v118 = vld [vmem:[%s0 + $0x338] sm:$0xff]
  %v119 = vld [vmem:[%s0 + $0x340] sm:$0xff]
  %v120 = vld [vmem:[%s0 + $0x348] sm:$0xff]
  %v121 = vld [vmem:[%s0 + $0x350] sm:$0xff]
  %v122 = vld [vmem:[%s0 + $0x358] sm:$0xff]
  %v123 = vld [vmem:[%s0 + $0x360] sm:$0xff]
  %v124 = vld [vmem:[%s0 + $0x368] sm:$0xff]
  %v125 = vld [vmem:[%s0 + $0x370] sm:$0xff]
  %v126 = vld [vmem:[%s0 + $0x378] sm:$0xff]
  %v127 = vld [vmem:[%s0 + $0x380] sm:$0xff]
  %v128 = vld [vmem:[%s0 + $0x388] sm:$0xff]
  %v129 = vld [vmem:[%s0 + $0x390] sm:$0xff]
  %v130 = vld [vmem:[%s0 + $0x398] sm:$0xff]
  %v131 = vld [vmem:[%s0 + $0x3a0] sm:$0xff]
  %v132 = vld [vmem:[%s0 + $0x3a8] sm:$0xff]
  %v133 = vld [vmem:[%s0 + $0x3b0] sm:$0xff]
  %v134 = vld [vmem:[%s0 + $0x3b8] sm:$0xff]
  %v135 = vld [vmem:[%s0 + $0x3c0] sm:$0x3f]
  %v136 = vld [vmem:[%s0 + $0x3c8] sm:$0x3f]
  %v137 = vld [vmem:[%s0 + $0x3d0] sm:$0x3f]
  %v138 = vld [vmem:[%s0 + $0x3d8] sm:$0x3f]
  %v139 = vld [vmem:[%s0 + $0x3e0] sm:$0x3f]
  %v140 = vld [vmem:[%s0 + $0x3e8] sm:$0x3f]
  %v141 = vld [vmem:[%s0 + $0x3f0] sm:$0x3f]
  %v142 = vld [vmem:[%s0 + $0x3f8] sm:$0x3f]
  %v143 = vld [vmem:[%s1] sm:$0xff]
  %v144 = vld [vmem:[%s1 + $0x8] sm:$0xff]
  %v145 = vld [vmem:[%s1 + $0x10] sm:$0xff]
  %v146 = vld [vmem:[%s1 + $0x18] sm:$0xff]
  %v147 = vld [vmem:[%s1 + $0x20] sm:$0xff]
  %v148 = vld [vmem:[%s1 + $0x28] sm:$0xff]
  %v149 = vld [vmem:[%s1 + $0x30] sm:$0xff]
  %v150 = vld [vmem:[%s1 + $0x38] sm:$0xff]
  %v151 = vld [vmem:[%s1 + $0x40] sm:$0xff]
  %v152 = vld [vmem:[%s1 + $0x48] sm:$0xff]
  %v153 = vld [vmem:[%s1 + $0x50] sm:$0xff]
  %v154 = vld [vmem:[%s1 + $0x58] sm:$0xff]
  %v155 = vld [vmem:[%s1 + $0x60] sm:$0xff]
  %v156 = vld [vmem:[%s1 + $0x68] sm:$0xff]
  %v157 = vld [vmem:[%s1 + $0x70] sm:$0xff]
  %v158 = vld [vmem:[%s1 + $0x78] sm:$0xff]
  %v159 = vld [vmem:[%s1 + $0x80] sm:$0xff]
  %v160 = vld [vmem:[%s1 + $0x88] sm:$0xff]
  %v161 = vld [vmem:[%s1 + $0x90] sm:$0xff]
  %v162 = vld [vmem:[%s1 + $0x98] sm:$0xff]
  %v163 = vld [vmem:[%s1 + $0xa0] sm:$0xff]
  %v164 = vld [vmem:[%s1 + $0xa8] sm:$0xff]
  %v165 = vld [vmem:[%s1 + $0xb0] sm:$0xff]
  %v166 = vld [vmem:[%s1 + $0xb8] sm:$0xff]
  %v167 = vld [vmem:[%s1 + $0xc0] sm:$0xff]
  %v168 = vld [vmem:[%s1 + $0xc8] sm:$0xff]
  %v169 = vld [vmem:[%s1 + $0xd0] sm:$0xff]
  %v170 = vld [vmem:[%s1 + $0xd8] sm:$0xff]
  %v171 = vld [vmem:[%s1 + $0xe0] sm:$0xff]
  %v172 = vld [vmem:[%s1 + $0xe8] sm:$0xff]
  %v173 = vld [vmem:[%s1 + $0xf0] sm:$0xff]
  %v174 = vld [vmem:[%s1 + $0xf8] sm:$0xff]
  %v175 = vld [vmem:[%s1 + $0x100] sm:$0xff]
  %v176 = vld [vmem:[%s1 + $0x108] sm:$0xff]
  %v177 = vld [vmem:[%s1 + $0x110] sm:$0xff]
  %v178 = vld [vmem:[%s1 + $0x118] sm:$0xff]
  %v179 = vld [vmem:[%s1 + $0x120] sm:$0xff]
  %v180 = vld [vmem:[%s1 + $0x128] sm:$0xff]
  %v181 = vld [vmem:[%s1 + $0x130] sm:$0xff]
  %v182 = vld [vmem:[%s1 + $0x138] sm:$0xff]
  %v183 = vld [vmem:[%s1 + $0x140] sm:$0xff]
  %v184 = vld [vmem:[%s1 + $0x148] sm:$0xff]
  %v185 = vld [vmem:[%s1 + $0x150] sm:$0xff]
  %v186 = vld [vmem:[%s1 + $0x158] sm:$0xff]
  %v187 = vld [vmem:[%s1 + $0x160] sm:$0xff]
  %v188 = vld [vmem:[%s1 + $0x168] sm:$0xff]
  %v189 = vld [vmem:[%s1 + $0x170] sm:$0xff]
  %v190 = vld [vmem:[%s1 + $0x178] sm:$0xff]
  %v191 = vld [vmem:[%s1 + $0x180] sm:$0xff]
  %v192 = vld [vmem:[%s1 + $0x188] sm:$0xff]
  %v193 = vld [vmem:[%s1 + $0x190] sm:$0xff]
  %v194 = vld [vmem:[%s1 + $0x198] sm:$0xff]
  %v195 = vld [vmem:[%s1 + $0x1a0] sm:$0xff]
  %v196 = vld [vmem:[%s1 + $0x1a8] sm:$0xff]
  %v197 = vld [vmem:[%s1 + $0x1b0] sm:$0xff]
  %v198 = vld [vmem:[%s1 + $0x1b8] sm:$0xff]
  %v199 = vld [vmem:[%s1 + $0x1c0] sm:$0x3f]
  %v200 = vld [vmem:[%s1 + $0x1c8] sm:$0x3f]
  %v201 = vld [vmem:[%s1 + $0x1d0] sm:$0x3f]
  %v202 = vld [vmem:[%s1 + $0x1d8] sm:$0x3f]
  %v203 = vld [vmem:[%s1 + $0x1e0] sm:$0x3f]
  %v204 = vld [vmem:[%s1 + $0x1e8] sm:$0x3f]
  %v205 = vld [vmem:[%s1 + $0x1f0] sm:$0x3f]
  %v206 = vld [vmem:[%s1 + $0x1f8] sm:$0x3f]
  %v207 = vmul.f32 %v15, %v143
  %v208 = vmul.f32 %v16, %v144
  %v209 = vmul.f32 %v17, %v145
  %v210 = vmul.f32 %v18, %v146
  %v211 = vmul.f32 %v19, %v147
  %v212 = vmul.f32 %v20, %v148
  %v213 = vmul.f32 %v21, %v149
  %v214 = vmul.f32 %v22, %v150
  %v215 = vmul.f32 %v23, %v151
  %v216 = vmul.f32 %v24, %v152
  %v217 = vmul.f32 %v25, %v153
  %v218 = vmul.f32 %v26, %v154
  %v219 = vmul.f32 %v27, %v155
  %v220 = vmul.f32 %v28, %v156
  %v221 = vmul.f32 %v29, %v157
  %v222 = vmul.f32 %v30, %v158
  %v223 = vmul.f32 %v31, %v159
  %v224 = vmul.f32 %v32, %v160
  %v225 = vmul.f32 %v33, %v161
  %v226 = vmul.f32 %v34, %v162
  %v227 = vmul.f32 %v35, %v163
  %v228 = vmul.f32 %v36, %v164
  %v229 = vmul.f32 %v37, %v165
  %v230 = vmul.f32 %v38, %v166
  %v231 = vmul.f32 %v39, %v167
  %v232 = vmul.f32 %v40, %v168
  %v233 = vmul.f32 %v41, %v169
  %v234 = vmul.f32 %v42, %v170
  %v235 = vmul.f32 %v43, %v171
  %v236 = vmul.f32 %v44, %v172
  %v237 = vmul.f32 %v45, %v173
  %v238 = vmul.f32 %v46, %v174
  %v239 = vmul.f32 %v47, %v175
  %v240 = vmul.f32 %v48, %v176
  %v241 = vmul.f32 %v49, %v177
  %v242 = vmul.f32 %v50, %v178
  %v243 = vmul.f32 %v51, %v179
  %v244 = vmul.f32 %v52, %v180
  %v245 = vmul.f32 %v53, %v181
  %v246 = vmul.f32 %v54, %v182
  %v247 = vmul.f32 %v55, %v183
  %v248 = vmul.f32 %v56, %v184
  %v249 = vmul.f32 %v57, %v185
  %v250 = vmul.f32 %v58, %v186
  %v251 = vmul.f32 %v59, %v187
  %v252 = vmul.f32 %v60, %v188
  %v253 = vmul.f32 %v61, %v189
  %v254 = vmul.f32 %v62, %v190
  %v255 = vmul.f32 %v63, %v191
  %v256 = vmul.f32 %v64, %v192
  %v257 = vmul.f32 %v65, %v193
  %v258 = vmul.f32 %v66, %v194
  %v259 = vmul.f32 %v67, %v195
  %v260 = vmul.f32 %v68, %v196
  %v261 = vmul.f32 %v69, %v197
  %v262 = vmul.f32 %v70, %v198
  %v263 = vmul.f32 %v71, %v199
  %v264 = vmul.f32 %v72, %v200
  %v265 = vmul.f32 %v73, %v201
  %v266 = vmul.f32 %v74, %v202
  %v267 = vmul.f32 %v75, %v203
  %v268 = vmul.f32 %v76, %v204
  %v269 = vmul.f32 %v77, %v205
  %v270 = vmul.f32 %v78, %v206
  %v271 = vmul.f32 %v79, %v143
  %v272 = vmul.f32 %v80, %v144
  %v273 = vmul.f32 %v81, %v145
  %v274 = vmul.f32 %v82, %v146
  %v275 = vmul.f32 %v83, %v147
  %v276 = vmul.f32 %v84, %v148
  %v277 = vmul.f32 %v85, %v149
  %v278 = vmul.f32 %v86, %v150
  %v279 = vmul.f32 %v87, %v151
  %v280 = vmul.f32 %v88, %v152
  %v281 = vmul.f32 %v89, %v153
  %v282 = vmul.f32 %v90, %v154
  %v283 = vmul.f32 %v91, %v155
  %v284 = vmul.f32 %v92, %v156
  %v285 = vmul.f32 %v93, %v157
  %v286 = vmul.f32 %v94, %v158
  %v287 = vmul.f32 %v95, %v159
  %v288 = vmul.f32 %v96, %v160
  %v289 = vmul.f32 %v97, %v161
  %v290 = vmul.f32 %v98, %v162
  %v291 = vmul.f32 %v99, %v163
  %v292 = vmul.f32 %v100, %v164
  %v293 = vmul.f32 %v101, %v165
  %v294 = vmul.f32 %v102, %v166
  %v295 = vmul.f32 %v103, %v167
  %v296 = vmul.f32 %v104, %v168
  %v297 = vmul.f32 %v105, %v169
  %v298 = vmul.f32 %v106, %v170
  %v299 = vmul.f32 %v107, %v171
  %v300 = vmul.f32 %v108, %v172
  %v301 = vmul.f32 %v109, %v173
  %v302 = vmul.f32 %v110, %v174
  %v303 = vmul.f32 %v111, %v175
  %v304 = vmul.f32 %v112, %v176
  %v305 = vmul.f32 %v113, %v177
  %v306 = vmul.f32 %v114, %v178
  %v307 = vmul.f32 %v115, %v179
  %v308 = vmul.f32 %v116, %v180
  %v309 = vmul.f32 %v117, %v181
  %v310 = vmul.f32 %v118, %v182
  %v311 = vmul.f32 %v119, %v183
  %v312 = vmul.f32 %v120, %v184
  %v313 = vmul.f32 %v121, %v185
  %v314 = vmul.f32 %v122, %v186
  %v315 = vmul.f32 %v123, %v187
  %v316 = vmul.f32 %v124, %v188
  %v317 = vmul.f32 %v125, %v189
  %v318 = vmul.f32 %v126, %v190
  %v319 = vmul.f32 %v127, %v191
  %v320 = vmul.f32 %v128, %v192
  %v321 = vmul.f32 %v129, %v193
  %v322 = vmul.f32 %v130, %v194
  %v323 = vmul.f32 %v131, %v195
  %v324 = vmul.f32 %v132, %v196
  %v325 = vmul.f32 %v133, %v197
  %v326 = vmul.f32 %v134, %v198
  %v327 = vmul.f32 %v135, %v199
  %v328 = vmul.f32 %v136, %v200
  %v329 = vmul.f32 %v137, %v201
  %v330 = vmul.f32 %v138, %v202
  %v331 = vmul.f32 %v139, %v203
  %v332 = vmul.f32 %v140, %v204
  %v333 = vmul.f32 %v141, %v205
  %v334 = vmul.f32 %v142, %v206
  %v335 = vadd.f32 %v207, %v208
  %v336 = vadd.f32 %v335, %v209
  %v337 = vadd.f32 %v336, %v210
  %v338 = vadd.f32 %v337, %v211
  %v339 = vadd.f32 %v338, %v212
  %v340 = vadd.f32 %v339, %v213
  %vm341 = vcmask 850944
  %v342 = vsel %vm341, %v214, 0.0
  %v343 = vadd.f32 %v340, %v342
  %344 = vadd.xlane.f32.xlu0 %v343
  %v345 = vpop.xlane.xlu0 %344
  %v346 = vadd.f32 %v215, %v216
  %v347 = vadd.f32 %v346, %v217
  %v348 = vadd.f32 %v347, %v218
  %v349 = vadd.f32 %v348, %v219
  %v350 = vadd.f32 %v349, %v220
  %v351 = vadd.f32 %v350, %v221
  %v352 = vsel %vm341, %v222, 0.0
  %v353 = vadd.f32 %v351, %v352
  %354 = vadd.xlane.f32.xlu0 %v353
  %v355 = vpop.xlane.xlu0 %354
  %v356 = vadd.f32 %v223, %v224
  %v357 = vadd.f32 %v356, %v225
  %v358 = vadd.f32 %v357, %v226
  %v359 = vadd.f32 %v358, %v227
  %v360 = vadd.f32 %v359, %v228
  %v361 = vadd.f32 %v360, %v229
  %v362 = vsel %vm341, %v230, 0.0
  %v363 = vadd.f32 %v361, %v362
  %364 = vadd.xlane.f32.xlu0 %v363
  %v365 = vpop.xlane.xlu0 %364
  %v366 = vadd.f32 %v231, %v232
  %v367 = vadd.f32 %v366, %v233
  %v368 = vadd.f32 %v367, %v234
  %v369 = vadd.f32 %v368, %v235
  %v370 = vadd.f32 %v369, %v236
  %v371 = vadd.f32 %v370, %v237
  %v372 = vsel %vm341, %v238, 0.0
  %v373 = vadd.f32 %v371, %v372
  %374 = vadd.xlane.f32.xlu0 %v373
  %v375 = vpop.xlane.xlu0 %374
  %v376 = vadd.f32 %v239, %v240
  %v377 = vadd.f32 %v376, %v241
  %v378 = vadd.f32 %v377, %v242
  %v379 = vadd.f32 %v378, %v243
  %v380 = vadd.f32 %v379, %v244
  %v381 = vadd.f32 %v380, %v245
  %v382 = vsel %vm341, %v246, 0.0
  %v383 = vadd.f32 %v381, %v382
  %384 = vadd.xlane.f32.xlu0 %v383
  %v385 = vpop.xlane.xlu0 %384
  %v386 = vadd.f32 %v247, %v248
  %v387 = vadd.f32 %v386, %v249
  %v388 = vadd.f32 %v387, %v250
  %v389 = vadd.f32 %v388, %v251
  %v390 = vadd.f32 %v389, %v252
  %v391 = vadd.f32 %v390, %v253
  %v392 = vsel %vm341, %v254, 0.0
  %v393 = vadd.f32 %v391, %v392
  %394 = vadd.xlane.f32.xlu0 %v393
  %v395 = vpop.xlane.xlu0 %394
  %v396 = vadd.f32 %v255, %v256
  %v397 = vadd.f32 %v396, %v257
  %v398 = vadd.f32 %v397, %v258
  %v399 = vadd.f32 %v398, %v259
  %v400 = vadd.f32 %v399, %v260
  %v401 = vadd.f32 %v400, %v261
  %v402 = vsel %vm341, %v262, 0.0
  %v403 = vadd.f32 %v401, %v402
  %404 = vadd.xlane.f32.xlu0 %v403
  %v405 = vpop.xlane.xlu0 %404
  %vm406 = vcmask 1045504
  %v407 = vsel %vm406, %v263, 0.0
  %v408 = vsel %vm406, %v264, 0.0
  %v409 = vadd.f32 %v407, %v408
  %v410 = vsel %vm406, %v265, 0.0
  %v411 = vadd.f32 %v409, %v410
  %v412 = vsel %vm406, %v266, 0.0
  %v413 = vadd.f32 %v411, %v412
  %v414 = vsel %vm406, %v267, 0.0
  %v415 = vadd.f32 %v413, %v414
  %v416 = vsel %vm406, %v268, 0.0
  %v417 = vadd.f32 %v415, %v416
  %v418 = vsel %vm406, %v269, 0.0
  %v419 = vadd.f32 %v417, %v418
  %vm420 = vcmask 848896
  %v421 = vsel %vm420, %v270, 0.0
  %v422 = vadd.f32 %v419, %v421
  %423 = vadd.xlane.f32.xlu0 %v422
  %v424 = vpop.xlane.xlu0 %423
  %v425 = vadd.f32 %v271, %v272
  %v426 = vadd.f32 %v425, %v273
  %v427 = vadd.f32 %v426, %v274
  %v428 = vadd.f32 %v427, %v275
  %v429 = vadd.f32 %v428, %v276
  %v430 = vadd.f32 %v429, %v277
  %v431 = vsel %vm341, %v278, 0.0
  %v432 = vadd.f32 %v430, %v431
  %433 = vadd.xlane.f32.xlu0 %v432
  %v434 = vpop.xlane.xlu0 %433
  %v435 = vadd.f32 %v279, %v280
  %v436 = vadd.f32 %v435, %v281
  %v437 = vadd.f32 %v436, %v282
  %v438 = vadd.f32 %v437, %v283
  %v439 = vadd.f32 %v438, %v284
  %v440 = vadd.f32 %v439, %v285
  %v441 = vsel %vm341, %v286, 0.0
  %v442 = vadd.f32 %v440, %v441
  %443 = vadd.xlane.f32.xlu0 %v442
  %v444 = vpop.xlane.xlu0 %443
  %v445 = vadd.f32 %v287, %v288
  %v446 = vadd.f32 %v445, %v289
  %v447 = vadd.f32 %v446, %v290
  %v448 = vadd.f32 %v447, %v291
  %v449 = vadd.f32 %v448, %v292
  %v450 = vadd.f32 %v449, %v293
  %v451 = vsel %vm341, %v294, 0.0
  %v452 = vadd.f32 %v450, %v451
  %453 = vadd.xlane.f32.xlu0 %v452
  %v454 = vpop.xlane.xlu0 %453
  %v455 = vadd.f32 %v295, %v296
  %v456 = vadd.f32 %v455, %v297
  %v457 = vadd.f32 %v456, %v298
  %v458 = vadd.f32 %v457, %v299
  %v459 = vadd.f32 %v458, %v300
  %v460 = vadd.f32 %v459, %v301
  %v461 = vsel %vm341, %v302, 0.0
  %v462 = vadd.f32 %v460, %v461
  %463 = vadd.xlane.f32.xlu0 %v462
  %v464 = vpop.xlane.xlu0 %463
  %v465 = vadd.f32 %v303, %v304
  %v466 = vadd.f32 %v465, %v305
  %v467 = vadd.f32 %v466, %v306
  %v468 = vadd.f32 %v467, %v307
  %v469 = vadd.f32 %v468, %v308
  %v470 = vadd.f32 %v469, %v309
  %v471 = vsel %vm341, %v310, 0.0
  %v472 = vadd.f32 %v470, %v471
  %473 = vadd.xlane.f32.xlu0 %v472
  %v474 = vpop.xlane.xlu0 %473
  %v475 = vadd.f32 %v311, %v312
  %v476 = vadd.f32 %v475, %v313
  %v477 = vadd.f32 %v476, %v314
  %v478 = vadd.f32 %v477, %v315
  %v479 = vadd.f32 %v478, %v316
  %v480 = vadd.f32 %v479, %v317
  %v481 = vsel %vm341, %v318, 0.0
  %v482 = vadd.f32 %v480, %v481
  %483 = vadd.xlane.f32.xlu0 %v482
  %v484 = vpop.xlane.xlu0 %483
  %v485 = vadd.f32 %v319, %v320
  %v486 = vadd.f32 %v485, %v321
  %v487 = vadd.f32 %v486, %v322
  %v488 = vadd.f32 %v487, %v323
  %v489 = vadd.f32 %v488, %v324
  %v490 = vadd.f32 %v489, %v325
  %v491 = vsel %vm341, %v326, 0.0
  %v492 = vadd.f32 %v490, %v491
  %493 = vadd.xlane.f32.xlu0 %v492
  %v494 = vpop.xlane.xlu0 %493
  %v495 = vsel %vm406, %v327, 0.0
  %v496 = vsel %vm406, %v328, 0.0
  %v497 = vadd.f32 %v495, %v496
  %v498 = vsel %vm406, %v329, 0.0
  %v499 = vadd.f32 %v497, %v498
  %v500 = vsel %vm406, %v330, 0.0
  %v501 = vadd.f32 %v499, %v500
  %v502 = vsel %vm406, %v331, 0.0
  %v503 = vadd.f32 %v501, %v502
  %v504 = vsel %vm406, %v332, 0.0
  %v505 = vadd.f32 %v503, %v504
  %v506 = vsel %vm406, %v333, 0.0
  %v507 = vadd.f32 %v505, %v506
  %v508 = vsel %vm420, %v334, 0.0
  %v509 = vadd.f32 %v507, %v508
  %510 = vadd.xlane.f32.xlu0 %v509
  %v511 = vpop.xlane.xlu0 %510
  %v528 = vlaneseq
  %v529 = vand.u32 %v528, 127
  %v530 = vlaneseq
  %v531 = vshrl.u32 %v530, 7
  %v532 = vsub.s32 %v529, %v531
  %v533 = vrot.slane %v345, %v532
  %v534 = vadd.s32 %v529, 4294967288
  %v535 = vlaneseq
  %v536 = vshrl.u32 %v535, 7
  %v537 = vsub.s32 %v534, %v536
  %v538 = vrot.slane %v355, %v537
  %vm539 = vcmask 130112
  %v540 = vsel %vm539, %v538, %v533
  %v541 = vadd.s32 %v529, 4294967280
  %v542 = vlaneseq
  %v543 = vshrl.u32 %v542, 7
  %v544 = vsub.s32 %v541, %v543
  %v545 = vrot.slane %v365, %v544
  %vm546 = vcmask 195712
  %v547 = vsel %vm546, %v545, %v540
  %v548 = vadd.s32 %v529, 4294967272
  %v549 = vlaneseq
  %v550 = vshrl.u32 %v549, 7
  %v551 = vsub.s32 %v548, %v550
  %v552 = vrot.slane %v375, %v551
  %vm553 = vcmask 261312
  %v554 = vsel %vm553, %v552, %v547
  %v555 = vadd.s32 %v529, 4294967264
  %v556 = vlaneseq
  %v557 = vshrl.u32 %v556, 7
  %v558 = vsub.s32 %v555, %v557
  %v559 = vrot.slane %v385, %v558
  %vm560 = vcmask 326912
  %v561 = vsel %vm560, %v559, %v554
  %v562 = vadd.s32 %v529, 4294967256
  %v563 = vlaneseq
  %v564 = vshrl.u32 %v563, 7
  %v565 = vsub.s32 %v562, %v564
  %v566 = vrot.slane %v395, %v565
  %vm567 = vcmask 392512
  %v568 = vsel %vm567, %v566, %v561
  %v569 = vadd.s32 %v529, 4294967248
  %v570 = vlaneseq
  %v571 = vshrl.u32 %v570, 7
  %v572 = vsub.s32 %v569, %v571
  %v573 = vrot.slane %v405, %v572
  %vm574 = vcmask 458112
  %v575 = vsel %vm574, %v573, %v568
  %v576 = vadd.s32 %v529, 4294967240
  %v577 = vlaneseq
  %v578 = vshrl.u32 %v577, 7
  %v579 = vsub.s32 %v576, %v578
  %v580 = vrot.slane %v424, %v579
  %vm581 = vcmask 523712
  %v582 = vsel %vm581, %v580, %v575
  %v583 = vlaneseq
  %v584 = vshrl.u32 %v583, 7
  %v585 = vsub.s32 %v529, %v584
  %v586 = vrot.slane %v434, %v585
  %v587 = vlaneseq
  %v588 = vshrl.u32 %v587, 7
  %v589 = vsub.s32 %v534, %v588
  %v590 = vrot.slane %v444, %v589
  %v591 = vsel %vm539, %v590, %v586
  %v592 = vlaneseq
  %v593 = vshrl.u32 %v592, 7
  %v594 = vsub.s32 %v541, %v593
  %v595 = vrot.slane %v454, %v594
  %v596 = vsel %vm546, %v595, %v591
  %v597 = vlaneseq
  %v598 = vshrl.u32 %v597, 7
  %v599 = vsub.s32 %v548, %v598
  %v600 = vrot.slane %v464, %v599
  %v601 = vsel %vm553, %v600, %v596
  %v602 = vlaneseq
  %v603 = vshrl.u32 %v602, 7
  %v604 = vsub.s32 %v555, %v603
  %v605 = vrot.slane %v474, %v604
  %v606 = vsel %vm560, %v605, %v601
  %v607 = vlaneseq
  %v608 = vshrl.u32 %v607, 7
  %v609 = vsub.s32 %v562, %v608
  %v610 = vrot.slane %v484, %v609
  %v611 = vsel %vm567, %v610, %v606
  %v612 = vlaneseq
  %v613 = vshrl.u32 %v612, 7
  %v614 = vsub.s32 %v569, %v613
  %v615 = vrot.slane %v494, %v614
  %v616 = vsel %vm574, %v615, %v611
  %v617 = vlaneseq
  %v618 = vshrl.u32 %v617, 7
  %v619 = vsub.s32 %v576, %v618
  %v620 = vrot.slane %v511, %v619
  %v621 = vsel %vm581, %v620, %v616
  %vm622 = vcmask 1041409
  %v623 = vsel %vm622, %v621, %v582
  %vm625 = vcmask 500736
  %v626 = vsel %vm625, %v623, 0.0
  %627 = vadd.xlane.f32.xlu0 %v626
  %v628 = vpop.xlane.xlu0 %627
  %s629 = sld [smem:[#allocation2]]
  %v630 = vstv %s629
  %v631 = vadd.f32 %v628, %v630
  %v632 = vmax.f32 %v631, 0.0
  %vm633 = vcmask 1024
  %634 = vst.msk [vmem:[%s3] sm:$0x3] %vm633, %v632
  // Predicated region
  $region14: #{tpu_custom_call.1} parent=0 // pred_check
    _
  $region15: #{tpu_custom_call.1} parent=0 // pred_check_branch
    %636 = sbr.rel (0) target = $region17
  $region16: #{tpu_custom_call.1} parent=0 // pred_region
    _
  $region17: #{tpu_custom_call.1} parent=0 // pred_fallthru
    _
  // Predicated region
  $region18: #{tpu_custom_call.1} parent=0 // pred_check
    _
  $region19: #{tpu_custom_call.1} parent=0 // pred_check_branch
    %638 = sbr.rel (0) target = $region21
  $region20: #{tpu_custom_call.1} parent=0 // pred_region
    _
  $region21: #{tpu_custom_call.1} parent=0 // pred_fallthru
    _

</llo_original>
